<compile_context>
chip_gen: v6e
topology: v6e:2x2x1
jax: 0.10.0
libtpu: 0.0.40
codegen_flags: <defaults>
</compile_context>

<pallas_src>
import functools
import math

import jax
import jax.numpy as jnp
from jax.experimental import pallas as pl
from jax.experimental.pallas import tpu as pltpu


def _choose_pack(seq_len: int, dim: int, max_width: int = 1024) -> int:
    """Pick packing factor k: (k*dim) % 128 == 0 always; prefer k | seq_len.

    k is a multiple of 128 // gcd(dim, 128), so the packed lane width is
    always a multiple of 128 (unmasked full-lane stores).  If no candidate
    divides seq_len we return the minimal one and the wrapper pads rows.
    """
    k_min = 128 // math.gcd(dim, 128)
    limit = max(max_width, k_min * dim)
    best = k_min
    k = k_min
    while k * dim <= limit:
        if seq_len % k == 0:
            best = k
        k += k_min
    return best


def _affine_kernel(step_ref, base_ref, out_ref, *, rows_per_block):
    """Non-striped path: out[r, l] = (r0 + r) * step[l] + base[l]."""
    r0 = pl.program_id(0) * rows_per_block
    step = step_ref[...]                                        # (1, width) f32
    # Fold the tile's row offset into the per-lane constant once per tile.
    base = base_ref[...] + r0.astype(jnp.float32) * step        # (1, width)
    # int iota + single cvt per vreg (float iota would lower the same way).
    row = jax.lax.broadcasted_iota(jnp.int32, out_ref.shape, 0).astype(jnp.float32)
    out_ref[...] = row * step + base


def _striped_kernel(sub_ref, inv_ref, out_ref, *, rows_per_block, k, n,
                    stride, offset):
    """Striped path: pos(j) = (j % n) * stride + j // n + offset, j = row*k+sub."""
    r0 = pl.program_id(0) * rows_per_block
    row = jax.lax.broadcasted_iota(jnp.int32, out_ref.shape, 0)
    j = row * k + (sub_ref[...] + r0 * k)                       # flat seq index
    if (n & (n - 1)) == 0:                                      # power of two
        shift = n.bit_length() - 1
        q = j >> shift
        rem = j & (n - 1)
    else:
        q = j // n                                              # single divide
        rem = j - q * n                                         # no second mod
    pos = (rem * stride + (q + offset)).astype(jnp.float32)
    out_ref[...] = pos * inv_ref[...]


def ring_rotary_embedding(
    seq_len: int,
    dim: int,
    *,
    ring: bool = False,
    striped: bool = False,
    buckets: int = 1,
    theta: float = 10000.0,
    world_size: int = 1,
    rank: int = 0,
    block_bytes: int = 8 * 1024 * 1024,
):
    """Reproduces RingRotaryEmbedding.forward(seq_len) -> (seq_len, dim) f32."""
    assert dim % 2 == 0, "dim must be even"

    inv_freq = theta ** (-(jnp.arange(0, dim, 2, dtype=jnp.float32) / dim))
    inv_full = jnp.concatenate([inv_freq, inv_freq])            # cat((freqs,freqs))

    # --- static position-pattern parameters (Python ints at trace time) ---
    if ring and striped:
        assert buckets >= 1 and seq_len % buckets == 0, \
            "seq_len must be divisible by buckets in striped mode"
        n = seq_len // buckets
        stride = world_size * buckets
        offset = rank * buckets
        striped_mode = True
    elif ring:
        n, stride, offset, striped_mode = seq_len, 1, seq_len * rank, False
    else:
        n, stride, offset, striped_mode = seq_len, 1, 0, False

    # --- lane-dense packing: (seq_len, dim) -> (rows_total, k*dim), pad rows ---
    k = _choose_pack(seq_len, dim)
    width = k * dim                                             # multiple of 128
    rows_total = -(-seq_len // k)                               # ceil
    padded_seq = rows_total * k

    inv_tiled = jnp.tile(inv_full, (k,))                        # (width,) f32
    sub = jnp.arange(width, dtype=jnp.int32) // dim             # lane -> sub-row

    # --- row tiling: ~8 MiB f32 blocks (rows multiple of 8), 1-D pipelined grid ---
    budget_rows = block_bytes // (width * 4)
    budget_rows = max(8, (budget_rows // 8) * 8)
    rows_per_block = rows_total if rows_total <= budget_rows else budget_rows
    grid_r = pl.cdiv(rows_total, rows_per_block)

    cparams = pltpu.CompilerParams(
        dimension_semantics=("parallel",),
        # 2 x 8 MiB double-buffered output + tiny inputs; explicit so the
        # larger tiles are also safe on v5e's 16 MiB scoped-VMEM default.
        vmem_limit_bytes=32 * 1024 * 1024,
    )

    if striped_mode:
        kernel = functools.partial(
            _striped_kernel, rows_per_block=rows_per_block,
            k=k, n=n, stride=stride, offset=offset)
        ins = (sub.reshape(1, width), inv_tiled.reshape(1, width))
    else:
        step_row = (float(k) * inv_tiled).reshape(1, width)
        base_row = ((sub.astype(jnp.float32) + float(offset))
                    * inv_tiled).reshape(1, width)
        kernel = functools.partial(_affine_kernel, rows_per_block=rows_per_block)
        ins = (step_row, base_row)

    in_specs = [pl.BlockSpec((1, width), lambda r: (0, 0)),
                pl.BlockSpec((1, width), lambda r: (0, 0))]

    out_wide = pl.pallas_call(
        kernel,
        out_shape=jax.ShapeDtypeStruct((rows_total, width), jnp.float32),
        grid=(grid_r,),
        in_specs=in_specs,
        out_specs=pl.BlockSpec((rows_per_block, width), lambda r: (r, 0)),
        compiler_params=cparams,
    )(*ins)

    out = out_wide.reshape(padded_seq, dim)                     # contiguous reshape
    if padded_seq != seq_len:
        out = out[:seq_len]                                     # drop pad rows
    return out


# ----------------------------- reference (JAX) ------------------------------
def _ref_table(seq_len, dim, *, ring=False, striped=False, buckets=1,
               theta=10000.0, world_size=1, rank=0):
    inv_freq = theta ** (-(jnp.arange(0, dim, 2, dtype=jnp.float32) / dim))
    if ring and striped:
        n = seq_len // buckets
        p = jnp.arange(n)[:, None] * (world_size * buckets)
        p = p + jnp.arange(buckets)[None, :] + rank * buckets
        p = p.T.reshape(-1)
    elif ring:
        p = jnp.arange(seq_len) + seq_len * rank
    else:
        p = jnp.arange(seq_len)
    f = p.astype(jnp.float32)[:, None] * inv_freq[None, :]
    return jnp.concatenate([f, f], axis=-1)


if __name__ == "__main__":
    key = jax.random.PRNGKey(0)   # forward is purely index/formula driven
    del key

    # 1) plain (non-ring), default construction -----------------------------
    S, D = 8, 32
    out = jax.block_until_ready(ring_rotary_embedding(S, D))
    ref = _ref_table(S, D)
    assert out.shape == (S, D) and out.dtype == jnp.float32
    assert jnp.allclose(out, ref, atol=1e-5, rtol=1e-6)

    # 2) ring + striped, power-of-two bucket size (shift/mask path) ---------
    out_rs = jax.block_until_ready(
        ring_rotary_embedding(S, D, ring=True, striped=True, buckets=2,
                              world_size=1, rank=0))
    ref_rs = _ref_table(S, D, ring=True, striped=True, buckets=2,
                        world_size=1, rank=0)
    assert out_rs.shape == (S, D)
    assert jnp.allclose(out_rs, ref_rs, atol=1e-5, rtol=1e-6)

    # 3) ring + striped, non-power-of-two n (single-divide path) ------------
    S3 = 12
    out_np2 = jax.block_until_ready(
        ring_rotary_embedding(S3, D, ring=True, striped=True, buckets=2,
                              world_size=2, rank=1))
    ref_np2 = _ref_table(S3, D, ring=True, striped=True, buckets=2,
                         world_size=2, rank=1)
    assert out_np2.shape == (S3, D)
    assert jnp.allclose(out_np2, ref_np2, atol=1e-5, rtol=1e-6)

    # 4) awkward seq_len exercising the row-padding fallback ----------------
    S4 = 10
    out_pad = jax.block_until_ready(ring_rotary_embedding(S4, D))
    ref_pad = _ref_table(S4, D)
    assert out_pad.shape == (S4, D)
    assert jnp.allclose(out_pad, ref_pad, atol=1e-5, rtol=1e-6)

    # 5) larger ring case; small block budget forces the multi-block grid ---
    S5, D5 = 16384, 64
    out_big = jax.block_until_ready(
        ring_rotary_embedding(S5, D5, ring=True, rank=0,
                              block_bytes=256 * 1024))
    ref_big = _ref_table(S5, D5, ring=True, rank=0)
    assert out_big.shape == (S5, D5)
    assert jnp.allclose(out_big, ref_big, atol=1e-4, rtol=1e-5)

    print("KERNEL_OK")
</pallas_src>

<mosaic_0001>
module attributes {stable_mosaic.version = 11 : i64} {
  func.func @_affine_kernel(%arg0: i32, %arg1: memref<1x256xf32, #tpu.memory_space<vmem>>, %arg2: memref<1x256xf32, #tpu.memory_space<vmem>>, %arg3: memref<1x256xf32, #tpu.memory_space<vmem>>) attributes {dimension_semantics = [#tpu.dimension_semantics<parallel>], iteration_bounds = array<i64: 1>, scalar_prefetch = 0 : i64, scratch_operands = 0 : i64, tpu.core_type = #tpu.core_type<tc>, window_params = [{pipeline_mode = #tpu.pipeline_mode<synchronous>, transform_indices = @transform_0, window_bounds = array<i64: 1, 256>}, {pipeline_mode = #tpu.pipeline_mode<synchronous>, transform_indices = @transform_1, window_bounds = array<i64: 1, 256>}, {transform_indices = @transform_2, window_bounds = array<i64: 1, 256>}]} {
    %c1_i32 = arith.constant 1 : i32
    %0 = arith.muli %arg0, %c1_i32 : i32
    %c0 = arith.constant 0 : index
    %c0_0 = arith.constant 0 : index
    %1 = vector.load %arg1[%c0, %c0_0] : memref<1x256xf32, #tpu.memory_space<vmem>>, vector<1x256xf32>
    %c0_1 = arith.constant 0 : index
    %c0_2 = arith.constant 0 : index
    %2 = vector.load %arg2[%c0_1, %c0_2] : memref<1x256xf32, #tpu.memory_space<vmem>>, vector<1x256xf32>
    %3 = arith.sitofp %0 : i32 to f32
    %4 = vector.broadcast %3 : f32 to vector<1x256xf32>
    %5 = arith.mulf %4, %1 : vector<1x256xf32>
    %6 = arith.addf %2, %5 : vector<1x256xf32>
    %7 = tpu.iota {dimensions = array<i32: 0>} : vector<1x256xi32>
    %8 = arith.sitofp %7 : vector<1x256xi32> to vector<1x256xf32>
    %9 = arith.mulf %8, %1 : vector<1x256xf32>
    %10 = arith.addf %9, %6 : vector<1x256xf32>
    %c0_3 = arith.constant 0 : index
    %c0_4 = arith.constant 0 : index
    %11 = vector.load %arg3[%c0_3, %c0_4] : memref<1x256xf32, #tpu.memory_space<vmem>>, vector<1x256xf32>
    tpu.vector_store %arg3[%c0_3, %c0_4], %10 {strides = array<i32>} : memref<1x256xf32, #tpu.memory_space<vmem>>, vector<1x256xf32>,
    return
  }
  func.func @transform_0(%arg0: i32) -> (i32, i32) {
    %c0_i32 = arith.constant 0 : i32
    %c0_i32_0 = arith.constant 0 : i32
    %c0_i32_1 = arith.constant 0 : i32
    return %c0_i32, %c0_i32_0 : i32, i32
  }
  func.func @transform_1(%arg0: i32) -> (i32, i32) {
    %c0_i32 = arith.constant 0 : i32
    %c0_i32_0 = arith.constant 0 : i32
    %c0_i32_1 = arith.constant 0 : i32
    return %c0_i32, %c0_i32_0 : i32, i32
  }
  func.func @transform_2(%arg0: i32) -> (i32, i32) {
    %c0_i32 = arith.constant 0 : i32
    %c0_i32_0 = arith.constant 0 : i32
    return %arg0, %c0_i32 : i32, i32
  }
}

</mosaic_0001>

<llo_original>
// kernel: tpu_custom_call.1
$region0: #{tpu_custom_call.1}
  #allocation0 [shape = 'u32[]', space=smem, size = 0x4, offset = 0x4, fixed_abs, tag = 'smem constant byte address 0x4 - core index']
  #allocation1 [shape = 'u32[144,128]{1,0:T(1,128)}', space=vmem, size = 0x12000, scoped, tag = 'internal scratch']
  %s0 = inlined_call_operand.hbm [shape: f32[1,256], index: 0, kind: input, shape index: {}]
  %s1 = inlined_call_operand.hbm [shape: f32[1,256], index: 1, kind: input, shape index: {}]
  %s2 = inlined_call_operand.hbm [shape: f32[1,256], index: 2, kind: output, shape index: {}]
  %s3 = sld [smem:[#allocation0]]
  $region26: #{tpu_custom_call.1} parent=0
    _
  %s5 = ssub.s32 1, %s3
  %s6 = scalar_select 0, %s5, %s3
  $region1: #{tpu_custom_call.1} parent=0
    #allocation2 [shape = 'u8[1024]{0}', space=vmem, size = 0x400, scoped, tag = 'input window, operand 0, single buffered']
    #allocation3 [shape = 's32[1]{0}', space=sflag, size = 0x4, scoped, tag = 'scoped memory for tpu_custom_call.1']
    #allocation4 [shape = 's32[1]{0}', space=sflag, size = 0x4, scoped, tag = 'scoped memory for tpu_custom_call.1']
    #allocation5 [shape = 'u8[1024]{0}', space=vmem, size = 0x400, scoped, tag = 'input window, operand 1, single buffered']
    #allocation6 [shape = 's32[1]{0}', space=sflag, size = 0x4, scoped, tag = 'scoped memory for tpu_custom_call.1']
    #allocation7 [shape = 'u8[1024]{0}', space=vmem, size = 0x400, scoped, tag = 'output window, operand 0, single buffered']
    %7 = vsyncpa [#allocation3], 0
    %8 = vsyncpa [#allocation6], 0
    %9 = vsyncpa [#allocation4], 0
    // Predicated region
    $region2: #{tpu_custom_call.1} parent=1 // pred_check
      _
    $region3: #{tpu_custom_call.1} parent=1 // pred_check_branch
      %11 = sbr.rel (0) target = $region5
    $region4: #{tpu_custom_call.1} parent=1 // pred_region
      %s13 = ssub.s32 32, 32
      %14 = vsyncadd [#allocation3], %s13
      %s16 = sshll.u32 [#allocation2], 4
      %s17 = int_to_ptr.vmem [resolvable:$true] %s16
      %19 = dma.hbm_to_vmem [thread:$0]  %s0, 32, %s17, [#allocation3]
    $region5: #{tpu_custom_call.1} parent=1 // pred_fallthru
      _
    // Predicated region
    $region6: #{tpu_custom_call.1} parent=1 // pred_check
      _
    $region7: #{tpu_custom_call.1} parent=1 // pred_check_branch
      %21 = sbr.rel (0) target = $region9
    $region8: #{tpu_custom_call.1} parent=1 // pred_region
      %s23 = ssub.s32 32, 32
      %24 = vsyncadd [#allocation6], %s23
      %s26 = sshll.u32 [#allocation5], 4
      %s27 = int_to_ptr.vmem [resolvable:$true] %s26
      %29 = dma.hbm_to_vmem [thread:$0]  %s1, 32, %s27, [#allocation6]
    $region9: #{tpu_custom_call.1} parent=1 // pred_fallthru
      _
    // Predicated region
    $region10: #{tpu_custom_call.1} parent=1 // pred_check
      _
    $region11: #{tpu_custom_call.1} parent=1 // pred_check_branch
      %31 = sbr.rel (0) target = $region13
    $region12: #{tpu_custom_call.1} parent=1 // pred_region
      %32 = dma.done [#allocation3], 32
    $region13: #{tpu_custom_call.1} parent=1 // pred_fallthru
      _
    // Predicated region
    $region14: #{tpu_custom_call.1} parent=1 // pred_check
      _
    $region15: #{tpu_custom_call.1} parent=1 // pred_check_branch
      %34 = sbr.rel (0) target = $region17
    $region16: #{tpu_custom_call.1} parent=1 // pred_region
      %35 = dma.done [#allocation6], 32
    $region17: #{tpu_custom_call.1} parent=1 // pred_fallthru
      _
    %v36 = vld [vmem:[#allocation2] sm:$0x3]
    %v37 = vld [vmem:[#allocation5] sm:$0x3]
    %s38 = scvt.s32.f32 0
    %v39 = vstv %s38
    %v40 = vmul.f32 %v39, %v36
    %v41 = vadd.f32 %v37, %v40
    %v42 = vlaneseq
    %v43 = vshrl.u32 %v42, 7
    %v44 = vcvt.s32.f32 %v43
    %v46 = vlaneseq
    %v47 = vshrl.u32 %v46, 7
    %v48 = vsub.s32 0, %v47
    %v49 = vrot.slane %v36, %v48
    %v50 = vlaneseq
    %v51 = vshrl.u32 %v50, 7
    %v52 = vsub.s32 1, %v51
    %v53 = vrot.slane %v36, %v52
    %v56 = vmul.f32 %v44, %v49
    %v57 = vmul.f32 %v44, %v53
    %v59 = vlaneseq
    %v60 = vshrl.u32 %v59, 7
    %v61 = vsub.s32 0, %v60
    %v62 = vrot.slane %v41, %v61
    %v63 = vlaneseq
    %v64 = vshrl.u32 %v63, 7
    %v65 = vsub.s32 1, %v64
    %v66 = vrot.slane %v41, %v65
    %v69 = vadd.f32 %v56, %v62
    %v70 = vadd.f32 %v57, %v66
    %v73 = vcombine.low %v69, %v70
    %v75 = vunpack.c.l.s4 1966171168
    %v76 = vunpack.c.0.s8 %v75
    %v77 = vlaneseq
    %v78 = vshrl.u32 %v77, 7
    %v79 = vsub.s32 %v76, %v78
    %v80 = vrot.slane %v73, %v79
    %v82 = vunpack.c.l.s4 1966171168
    %v83 = vunpack.c.0.s8 %v82
    %v84 = vlaneseq
    %v85 = vshrl.u32 %v84, 7
    %v86 = vsub.s32 %v83, %v85
    %v87 = vrot.slane %v80, %v86
    %v89 = vlaneseq
    %vm90 = vcmp.ge.s32.totalorder %v89, 0
    %vm91 = vcmp.lt.s32.totalorder %v89, 256
    %vm92 = vmand %vm90, %vm91
    %93 = vst.msk [vmem:[#allocation7] sm:$0x3] %vm92, %v87
    // Predicated region
    $region18: #{tpu_custom_call.1} parent=1 // pred_check
      _
    $region19: #{tpu_custom_call.1} parent=1 // pred_check_branch
      %95 = sbr.rel (0) target = $region21
    $region20: #{tpu_custom_call.1} parent=1 // pred_region
      %s97 = ssub.s32 32, 32
      %98 = vsyncadd [#allocation4], %s97
      %s100 = sshll.u32 [#allocation7], 4
      %s101 = int_to_ptr.vmem [resolvable:$true] %s100
      %103 = dma.vmem_to_hbm [thread:$0]  %s101, 32, %s2, [#allocation4]
    $region21: #{tpu_custom_call.1} parent=1 // pred_fallthru
      _
    // Predicated region
    $region22: #{tpu_custom_call.1} parent=1 // pred_check
      _
    $region23: #{tpu_custom_call.1} parent=1 // pred_check_branch
      %105 = sbr.rel (0) target = $region25
    $region24: #{tpu_custom_call.1} parent=1 // pred_region
      %106 = dma.done [#allocation4], 32
    $region25: #{tpu_custom_call.1} parent=1 // pred_fallthru
      _
    %107 = vsyncpa [#allocation3], 1
    %108 = vsyncpa [#allocation6], 1
    %109 = vsyncpa [#allocation4], 1

</llo_original>
